<compile_context>
chip_gen: v5e
topology: v5e:2x2
jax: 0.10.0
libtpu: 0.0.40
codegen_flags: <defaults>
</compile_context>

<pallas_src>
import math

import jax
import jax.numpy as jnp
from jax import lax
from jax.experimental import pallas as pl
from jax.experimental.pallas import tpu as pltpu


def _round_up(x: int, m: int) -> int:
    return (x + m - 1) // m * m


def _vmem_limit_bytes() -> int:
    try:
        cap = int(pltpu.get_tpu_info().vmem_capacity_bytes)
    except Exception:
        cap = 64 * 1024 * 1024          # conservative default: v7x per-TensorCore VMEM
    return min((cap * 3) // 4, 100 * 1024 * 1024)


def _choose_query_tile(n: int) -> int:
    """Query-axis tile so the (tq, N) softmax temporaries stay VMEM-friendly."""
    if n <= 512:
        return n
    for tq in (512, 256, 128):
        if n % tq == 0:
            return tq
    # TODO(synk): ragged query tiling for large N not divisible by 128.
    return n


def _choose_block_batch(b: int, n: int, f_in_p: int, f_out_p: int,
                        tq: int, vmem_budget: int) -> int:
    """How many batches to fold into one grid step."""
    tb_unit = 8 // math.gcd(n, 8)        # keeps (TB*N) % 8 == 0 for the 2-D block specs
    # Bytes that scale with TB: double-buffered IO blocks + per-tile scratch.
    per_b = (2 * (n * f_in_p * 2         # text (bf16)
                  + n * n                # adj mask (int8)
                  + n * f_out_p * 4)     # out (f32)
             + n * f_out_p * 6           # hidden f32 value + bf16 scratch copy
             + n * 512)                  # (TB*N, 2) f32 src/dst scratch (tile padded)
    # TB-independent: weights (double-buffered) + one (tq, N) softmax working set.
    fixed = 2 * (f_in_p * f_out_p * 2 + 8 * f_out_p * 4) + 5 * tq * n * 4
    if vmem_budget > fixed + per_b:
        tb_fit = max(1, int((vmem_budget - fixed) // per_b))
    else:
        tb_fit = 1
    tb_target = max(1, 512 // n)         # aim for >= ~512 rows in the fused hidden matmul
    tb = max(1, min(b, tb_fit, tb_target))
    tb = _round_up(tb, tb_unit)
    # Keep at least 2 grid steps when the batch allows it (v7x has 2 TensorCores/chip).
    while tb > tb_unit and _round_up(b, tb) // tb < 2:
        tb -= tb_unit
    return max(tb, tb_unit)


def _make_gat_kernel(leaky_slope: float, tb: int, n: int, tq: int, f_out: int):
    src_col = f_out                       # column holding text @ (W a_src) + b·a_src
    use_max = 0.0 <= leaky_slope <= 1.0   # max(x, s*x) == LeakyReLU(x) for s in [0, 1]
    nq = n // tq

    def gat_kernel(text_ref, adj_ref, w_ref, b_ref, out_ref, hid_ref, sd_ref):
        # text_ref : (TB*N, F_in_p)  bf16     adj_ref : (TB, N, N) int8 (0/1)
        # w_ref    : (F_in_p, F_out_p) bf16   b_ref   : (1, F_out_p) f32
        # out_ref  : (TB*N, F_out_p) f32
        # hid_ref  : (TB*N, F_out_p) bf16 scratch
        # sd_ref   : (TB*N, 2) f32 scratch  (col 0 = src proj, col 1 = dst proj)

        # One lane-dense bf16 MXU matmul for all folded batches; the a_src / a_dst
        # projections ride along as two extra (padded) output columns of W.
        hidden = jnp.dot(text_ref[...], w_ref[...],
                         preferred_element_type=jnp.float32)       # (TB*N, F_out_p) f32
        hidden = hidden + b_ref[...]
        hid_ref[...] = hidden.astype(jnp.bfloat16)
        sd_ref[...] = hidden[:, src_col:src_col + 2]                # f32 src/dst columns

        def one_batch(t, carry):
            lo = pl.multiple_of(t * n, n)
            h_t = hid_ref[pl.ds(lo, n), :]                          # (N, F_out_p) bf16
            dst_row = jnp.transpose(sd_ref[pl.ds(lo, n), 1:2])      # (1, N) f32

            def one_qblock(q, inner):
                qlo = pl.multiple_of(q * tq, tq)                    # row offset in batch
                qo = pl.multiple_of(lo + qlo, tq)                   # row offset in tile
                src = sd_ref[pl.ds(qo, tq), 0:1]                    # (tq, 1) f32

                e = src + dst_row                                   # (tq, N) f32
                if use_max:
                    e = jnp.maximum(e, leaky_slope * e)             # LeakyReLU
                else:
                    e = jnp.where(e >= 0.0, e, leaky_slope * e)
                adj_q = adj_ref[t, pl.ds(qlo, tq), :]               # (tq, N) int8
                e = jnp.where(adj_q != 0, -10000.0, e)              # masked_fill(adj.bool())

                # Row softmax (f32 math, approx reciprocal on the EUP).
                e_max = jnp.max(e, axis=-1, keepdims=True)
                p = jnp.exp(e - e_max)
                inv = pl.reciprocal(jnp.sum(p, axis=-1, keepdims=True), approx=True)
                attn = (p * inv).astype(jnp.bfloat16)

                # attention @ hidden in bf16 with f32 accumulation.
                out_ref[pl.ds(qo, tq), :] = jnp.dot(
                    attn, h_t, preferred_element_type=jnp.float32)
                return inner

            lax.fori_loop(0, nq, one_qblock, 0, unroll=(nq <= 2))
            return carry

        lax.fori_loop(0, tb, one_batch, 0, unroll=(tb <= 4))

    return gat_kernel


def graph_attention(text, adj, w, b, a_src, a_dst, leaky_slope=0.2, block_batch=None):
    """text: (B, N, F_in), adj: (B, N, N) (nonzero => masked), w: (F_in, F_out),
    b/a_src/a_dst: (F_out,). Returns (B, N, F_out) float32."""
    B, N, F_in = text.shape
    F_out = w.shape[1]
    f32 = jnp.float32

    F_in_p = _round_up(F_in, 128)
    F_out_p = _round_up(F_out + 2, 128)     # +2 cols: folded a_src / a_dst projections
    TQ = _choose_query_tile(N)

    vmem_limit = _vmem_limit_bytes()
    tb_unit = 8 // math.gcd(N, 8)
    if block_batch is None:
        TB = _choose_block_batch(B, N, F_in_p, F_out_p, TQ, (vmem_limit * 3) // 5)
    else:
        TB = _round_up(max(1, min(int(block_batch), B)), tb_unit)
    B_p = _round_up(B, TB)
    grid = (B_p // TB,)

    # --- Host-side packing: one fused cast/pad per operand ----------------------
    text2 = jnp.pad(text.astype(jnp.bfloat16),
                    ((0, B_p - B), (0, 0), (0, F_in_p - F_in))).reshape(B_p * N, F_in_p)
    adj_m = jnp.pad((adj != 0).astype(jnp.int8), ((0, B_p - B), (0, 0), (0, 0)))

    w32 = w.astype(f32)
    b32 = b.astype(f32)
    asrc32 = a_src.astype(f32)
    adst32 = a_dst.astype(f32)
    # Fold the 1-wide src/dst projections into the weight matrix / bias.
    w_aug = jnp.concatenate(
        [w32, (w32 @ asrc32)[:, None], (w32 @ adst32)[:, None]], axis=1)
    w_p = jnp.pad(w_aug, ((0, F_in_p - F_in), (0, F_out_p - F_out - 2))
                  ).astype(jnp.bfloat16)
    b_aug = jnp.concatenate(
        [b32, jnp.dot(b32, asrc32)[None], jnp.dot(b32, adst32)[None]])
    b_p = jnp.pad(b_aug, (0, F_out_p - F_out - 2))[None, :]

    kernel = _make_gat_kernel(float(leaky_slope), TB, N, TQ, F_out)

    flops = (2 * B_p * N * F_in_p * F_out_p       # hidden matmul (+ folded projections)
             + 2 * B_p * N * N * F_out_p          # attn @ hidden
             + 7 * B_p * N * N)                   # leaky / mask / softmax elementwise
    bytes_accessed = (text2.size * 2 + adj_m.size + B_p * N * F_out_p * 4
                      + w_p.size * 2 + b_p.size * 4)
    cost = pl.CostEstimate(flops=int(flops),
                           transcendentals=int(B_p * N * N + B_p * N),
                           bytes_accessed=int(bytes_accessed))

    out2 = pl.pallas_call(
        kernel,
        out_shape=jax.ShapeDtypeStruct((B_p * N, F_out_p), jnp.float32),
        grid_spec=pltpu.PrefetchScalarGridSpec(
            num_scalar_prefetch=0,
            grid=grid,
            in_specs=[
                pl.BlockSpec((TB * N, F_in_p),  lambda i: (i, 0)),     # text (flat, bf16)
                pl.BlockSpec((TB, N, N),        lambda i: (i, 0, 0)),  # adj mask (int8)
                pl.BlockSpec((F_in_p, F_out_p), lambda i: (0, 0)),     # W (+ folded cols)
                pl.BlockSpec((1, F_out_p),      lambda i: (0, 0)),     # bias (+ folded)
            ],
            out_specs=pl.BlockSpec((TB * N, F_out_p), lambda i: (i, 0)),
            scratch_shapes=[
                pltpu.VMEM((TB * N, F_out_p), jnp.bfloat16),   # hidden (bf16)
                pltpu.VMEM((TB * N, 2), jnp.float32),          # [src, dst] projections
            ],
        ),
        compiler_params=pltpu.CompilerParams(
            dimension_semantics=("parallel",),
            vmem_limit_bytes=int(vmem_limit),
        ),
        cost_estimate=cost,
    )(text2, adj_m, w_p, b_p)

    return out2.reshape(B_p, N, F_out_p)[:B, :, :F_out]


def graph_attention_ref(text, adj, w, b, a_src, a_dst, leaky_slope=0.2):
    """Pure-JAX reference mirroring the PyTorch forward exactly (f32)."""
    hidden = jnp.einsum("bnf,fo->bno", text, w) + b
    src = jnp.einsum("bno,o->bn", hidden, a_src)[:, :, None]
    dst = jnp.einsum("bno,o->bn", hidden, a_dst)[:, None, :]
    e = src + dst
    e = jnp.where(e >= 0.0, e, leaky_slope * e)
    e = jnp.where(adj != 0, -10000.0, e)
    attn = jax.nn.softmax(e, axis=-1)
    return jnp.einsum("bnm,bmo->bno", attn, hidden)


if __name__ == "__main__":
    key = jax.random.PRNGKey(0)
    k_text, k_adj, k_w, k_b, k_as, k_ad = jax.random.split(key, 6)

    B, N = 2, 8
    in_features, out_features = 16, 32
    leaky = 0.2

    text = jax.random.normal(k_text, (B, N, in_features), dtype=jnp.float32)
    adj = (jax.random.uniform(k_adj, (B, N, N)) > 0.5).astype(jnp.int32)

    w = jax.random.normal(k_w, (in_features, out_features), dtype=jnp.float32) * 0.1
    b = jax.random.normal(k_b, (out_features,), dtype=jnp.float32) * 0.1
    a_src = jax.random.normal(k_as, (out_features,), dtype=jnp.float32) * 0.1
    a_dst = jax.random.normal(k_ad, (out_features,), dtype=jnp.float32) * 0.1

    out = graph_attention(text, adj, w, b, a_src, a_dst, leaky)
    out = jax.block_until_ready(out)

    ref = graph_attention_ref(text, adj, w, b, a_src, a_dst, leaky)
    assert out.shape == (B, N, out_features)
    # bf16 MXU operands + approx reciprocal -> loosen tolerance vs. the f32 reference.
    assert jnp.allclose(out, ref, atol=2e-2, rtol=2e-2), "mismatch vs reference"

    print("KERNEL_OK")
</pallas_src>

<mosaic_0001>
module attributes {stable_mosaic.version = 11 : i64} {
  func.func @gat_kernel(%arg0: i32, %arg1: memref<8x128xbf16, #tpu.memory_space<vmem>>, %arg2: memref<1x8x8xi8, #tpu.memory_space<vmem>>, %arg3: memref<128x128xbf16, #tpu.memory_space<vmem>>, %arg4: memref<1x128xf32, #tpu.memory_space<vmem>>, %arg5: memref<8x128xf32, #tpu.memory_space<vmem>>, %arg6: memref<8x128xbf16, #tpu.memory_space<vmem>>, %arg7: memref<8x2xf32, #tpu.memory_space<vmem>>) attributes {dimension_semantics = [#tpu.dimension_semantics<parallel>], iteration_bounds = array<i64: 2>, scalar_prefetch = 0 : i64, scratch_operands = 2 : i64, tpu.core_type = #tpu.core_type<tc>, window_params = [{transform_indices = @transform_0, window_bounds = array<i64: 8, 128>}, {transform_indices = @transform_1, window_bounds = array<i64: 1, 8, 8>}, {pipeline_mode = #tpu.pipeline_mode<synchronous>, transform_indices = @transform_2, window_bounds = array<i64: 128, 128>}, {pipeline_mode = #tpu.pipeline_mode<synchronous>, transform_indices = @transform_3, window_bounds = array<i64: 1, 128>}, {transform_indices = @transform_4, window_bounds = array<i64: 8, 128>}]} {
    %c0 = arith.constant 0 : index
    %c0_0 = arith.constant 0 : index
    %0 = vector.load %arg1[%c0, %c0_0] : memref<8x128xbf16, #tpu.memory_space<vmem>>, vector<8x128xbf16>
    %c0_1 = arith.constant 0 : index
    %c0_2 = arith.constant 0 : index
    %1 = vector.load %arg3[%c0_1, %c0_2] : memref<128x128xbf16, #tpu.memory_space<vmem>>, vector<128x128xbf16>
    %cst = arith.constant dense<0.000000e+00> : vector<8x128xf32>
    %2 = tpu.matmul %0, %1, %cst {dimension_numbers = #tpu.dot_dimension_numbers<[1], [0], [0], [1], [0, 0, 1, 1], [], []>} : vector<8x128xbf16>, vector<128x128xbf16>, vector<8x128xf32> -> vector<8x128xf32>
    %c0_3 = arith.constant 0 : index
    %c0_4 = arith.constant 0 : index
    %3 = vector.load %arg4[%c0_3, %c0_4] : memref<1x128xf32, #tpu.memory_space<vmem>>, vector<1x128xf32>
    %4 = vector.broadcast %3 : vector<1x128xf32> to vector<8x128xf32>
    %5 = arith.addf %2, %4 : vector<8x128xf32>
    %6 = arith.truncf %5 : vector<8x128xf32> to vector<8x128xbf16>
    %c0_5 = arith.constant 0 : index
    %c0_6 = arith.constant 0 : index
    %7 = vector.load %arg6[%c0_5, %c0_6] : memref<8x128xbf16, #tpu.memory_space<vmem>>, vector<8x128xbf16>
    tpu.vector_store %arg6[%c0_5, %c0_6], %6 {strides = array<i32>} : memref<8x128xbf16, #tpu.memory_space<vmem>>, vector<8x128xbf16>,
    %8 = vector.extract_strided_slice %5 {offsets = [0, 32], sizes = [8, 2], strides = [1, 1]} : vector<8x128xf32> to vector<8x2xf32>
    %c0_7 = arith.constant 0 : index
    %c0_8 = arith.constant 0 : index
    %9 = vector.load %arg7[%c0_7, %c0_8] : memref<8x2xf32, #tpu.memory_space<vmem>>, vector<8x2xf32>
    tpu.vector_store %arg7[%c0_7, %c0_8], %8 {strides = array<i32>} : memref<8x2xf32, #tpu.memory_space<vmem>>, vector<8x2xf32>,
    %c0_i32 = arith.constant 0 : i32
    %c8_i32 = arith.constant 8 : i32
    %10 = arith.muli %c0_i32, %c8_i32 : i32
    %11 = tpu.assume_multiple %10, 8 : i32
    %12 = arith.index_cast %11 : i32 to index
    %c0_9 = arith.constant 0 : index
    %13 = vector.load %arg6[%12, %c0_9] : memref<8x128xbf16, #tpu.memory_space<vmem>>, vector<8x128xbf16>
    %14 = arith.index_cast %11 : i32 to index
    %c1 = arith.constant 1 : index
    %15 = vector.load %arg7[%14, %c1] : memref<8x2xf32, #tpu.memory_space<vmem>>, vector<8x1xf32>
    %16 = tpu.transpose %15, [1, 0] : vector<8x1xf32> -> vector<1x8xf32>
    %c0_i32_10 = arith.constant 0 : i32
    %c8_i32_11 = arith.constant 8 : i32
    %17 = arith.muli %c0_i32_10, %c8_i32_11 : i32
    %18 = tpu.assume_multiple %17, 8 : i32
    %19 = arith.addi %11, %18 : i32
    %20 = tpu.assume_multiple %19, 8 : i32
    %21 = arith.index_cast %20 : i32 to index
    %c0_12 = arith.constant 0 : index
    %22 = vector.load %arg7[%21, %c0_12] : memref<8x2xf32, #tpu.memory_space<vmem>>, vector<8x1xf32>
    %23 = vector.broadcast %22 : vector<8x1xf32> to vector<8x8xf32>
    %24 = vector.broadcast %16 : vector<1x8xf32> to vector<8x8xf32>
    %25 = arith.addf %23, %24 : vector<8x8xf32>
    %cst_13 = arith.constant 2.000000e-01 : f32
    %26 = vector.broadcast %cst_13 : f32 to vector<8x8xf32>
    %27 = arith.mulf %26, %25 : vector<8x8xf32>
    %28 = arith.maximumf %25, %27 : vector<8x8xf32>
    %29 = arith.index_cast %c0_i32 : i32 to index
    %30 = arith.index_cast %18 : i32 to index
    %c0_14 = arith.constant 0 : index
    %31 = vector.load %arg2[%29, %30, %c0_14] : memref<1x8x8xi8, #tpu.memory_space<vmem>>, vector<1x8x8xi8>
    %32 = vector.shape_cast %31 : vector<1x8x8xi8> to vector<8x8xi8>
    %c0_i8 = arith.constant 0 : i8
    %33 = vector.broadcast %c0_i8 : i8 to vector<8x8xi8>
    %34 = arith.cmpi ne, %32, %33 : vector<8x8xi8>
    %cst_15 = arith.constant -1.000000e+04 : f32
    %35 = vector.broadcast %cst_15 : f32 to vector<8x8xf32>
    %36 = arith.select %34, %35, %28 : vector<8x8xi1>, vector<8x8xf32>
    %cst_16 = arith.constant dense<0xFF800000> : vector<8xf32>
    %37 = vector.multi_reduction <maximumf>, %36, %cst_16 [1] : vector<8x8xf32> to vector<8xf32>
    %38 = vector.shape_cast %37 : vector<8xf32> to vector<8x1xf32>
    %39 = vector.broadcast %38 : vector<8x1xf32> to vector<8x8xf32>
    %40 = arith.subf %36, %39 : vector<8x8xf32>
    %41 = math.exp %40 : vector<8x8xf32>
    %cst_17 = arith.constant dense<0.000000e+00> : vector<8xf32>
    %42 = vector.multi_reduction <add>, %41, %cst_17 [1] : vector<8x8xf32> to vector<8xf32>
    %43 = vector.shape_cast %42 : vector<8xf32> to vector<8x1xf32>
    %44 = tpu.reciprocal %43 {approx = true} : vector<8x1xf32> -> vector<8x1xf32>
    %45 = vector.broadcast %44 : vector<8x1xf32> to vector<8x8xf32>
    %46 = arith.mulf %41, %45 : vector<8x8xf32>
    %47 = arith.truncf %46 : vector<8x8xf32> to vector<8x8xbf16>
    %cst_18 = arith.constant dense<0.000000e+00> : vector<8x128xf32>
    %48 = tpu.matmul %47, %13, %cst_18 {dimension_numbers = #tpu.dot_dimension_numbers<[1], [0], [0], [1], [0, 0, 1, 1], [], []>} : vector<8x8xbf16>, vector<8x128xbf16>, vector<8x128xf32> -> vector<8x128xf32>
    %49 = arith.index_cast %20 : i32 to index
    %c0_19 = arith.constant 0 : index
    %50 = vector.load %arg5[%49, %c0_19] : memref<8x128xf32, #tpu.memory_space<vmem>>, vector<8x128xf32>
    tpu.vector_store %arg5[%49, %c0_19], %48 {strides = array<i32>} : memref<8x128xf32, #tpu.memory_space<vmem>>, vector<8x128xf32>,
    %c1_i32 = arith.constant 1 : i32
    %c1_i32_20 = arith.constant 1 : i32
    return
  }
  func.func @transform_0(%arg0: i32) -> (i32, i32) {
    %c0_i32 = arith.constant 0 : i32
    %c0_i32_0 = arith.constant 0 : i32
    return %arg0, %c0_i32 : i32, i32
  }
  func.func @transform_1(%arg0: i32) -> (i32, i32, i32) {
    %c0_i32 = arith.constant 0 : i32
    %c0_i32_0 = arith.constant 0 : i32
    %c0_i32_1 = arith.constant 0 : i32
    return %arg0, %c0_i32, %c0_i32_0 : i32, i32, i32
  }
  func.func @transform_2(%arg0: i32) -> (i32, i32) {
    %c0_i32 = arith.constant 0 : i32
    %c0_i32_0 = arith.constant 0 : i32
    %c0_i32_1 = arith.constant 0 : i32
    return %c0_i32, %c0_i32_0 : i32, i32
  }
  func.func @transform_3(%arg0: i32) -> (i32, i32) {
    %c0_i32 = arith.constant 0 : i32
    %c0_i32_0 = arith.constant 0 : i32
    %c0_i32_1 = arith.constant 0 : i32
    return %c0_i32, %c0_i32_0 : i32, i32
  }
  func.func @transform_4(%arg0: i32) -> (i32, i32) {
    %c0_i32 = arith.constant 0 : i32
    %c0_i32_0 = arith.constant 0 : i32
    return %arg0, %c0_i32 : i32, i32
  }
}

</mosaic_0001>

<llo_original>
// kernel: tpu_custom_call.1
$region0: #{tpu_custom_call.1}
  #allocation0 [shape = 'u32[]', space=smem, size = 0x4, offset = 0x4, fixed_abs, tag = 'smem constant byte address 0x4 - core index']
  #allocation1 [shape = 'u32[72,128]{1,0:T(1,128)}', space=vmem, size = 0x9000, scoped, tag = 'internal scratch']
  #allocation2 [shape = 'bf16[8,128]{1,0:T(8,128)(2,1)}', space=vmem, size = 0x800, scoped, tag = 'scratch operand']
  #allocation3 [shape = 'f32[8,2]{1,0:T(8,128)}', space=vmem, size = 0x1000, scoped, tag = 'scratch operand']
  %s0 = inlined_call_operand.hbm [shape: bf16[16,128], index: 0, kind: input, shape index: {}]
  %s1 = inlined_call_operand.hbm [shape: s8[2,8,8], index: 1, kind: input, shape index: {}]
  %s2 = inlined_call_operand.hbm [shape: bf16[128,128], index: 2, kind: input, shape index: {}]
  %s3 = inlined_call_operand.vmem [shape: f32[1,128], index: 3, kind: input, shape index: {}]
  %s4 = inlined_call_operand.hbm [shape: f32[16,128], index: 4, kind: output, shape index: {}]
  %s5 = sld [smem:[#allocation0]]
  $region61: #{tpu_custom_call.1} parent=0
    _
  %s7 = ssub.s32 1, %s5
  %s8 = scalar_select 0, %s7, %s5
  $region1: #{tpu_custom_call.1} parent=0
    #allocation4 [shape = 'u8[4096]{0}', space=vmem, size = 0x1000, scoped, tag = 'input window, operand 0']
    #allocation5 [shape = 's32[2]{0}', space=sflag, size = 0x8, scoped, tag = 'scoped memory for tpu_custom_call.1']
    #allocation6 [shape = 's32[2]{0}', space=sflag, size = 0x8, scoped, tag = 'scoped memory for tpu_custom_call.1']
    #allocation7 [shape = 'u8[2048]{0}', space=vmem, size = 0x800, scoped, tag = 'input window, operand 1']
    #allocation8 [shape = 's32[2]{0}', space=sflag, size = 0x8, scoped, tag = 'scoped memory for tpu_custom_call.1']
    #allocation9 [shape = 'u8[32768]{0}', space=vmem, size = 0x8000, scoped, tag = 'input window, operand 2, single buffered']
    #allocation10 [shape = 'u8[8192]{0}', space=vmem, size = 0x2000, scoped, tag = 'output window, operand 0']
    %9 = vsyncpa [#allocation5], 0
    %s10 = scalar_lea.sflag [#allocation5], 1
    %11 = vsyncpa %s10, 0
    %12 = vsyncpa [#allocation8], 0
    %s13 = scalar_lea.sflag [#allocation8], 1
    %14 = vsyncpa %s13, 0
    %15 = vsyncpa [#allocation6], 0
    %s16 = scalar_lea.sflag [#allocation6], 1
    %17 = vsyncpa %s16, 0
    loop: start=0, step=1, limit=4
    $region2: #{tpu_custom_call.1} parent=1 // loop_pre_header
      _
    $region3: #{tpu_custom_call.1} parent=1 // loop_header
      %s19 = sphi 0, %s23
      %p20 = scmp.ge.s32.totalorder %s19, 4
      %s29 = sphi 0, %s31
      %s32 = sphi 0, %s29
      %s33 = sphi 0, %s32
      %s49 = sphi 0, %s33
      %s55 = sphi 0, %s57
      %s58 = sphi 0, %s55
      %s59 = sphi 0, %s58
      %s75 = sphi 0, %s59
      %s79 = sphi 0, %s79
      %s81 = sphi 0, %s79
      %s82 = sphi 0, %s81
      %s96 = sphi 0, %s82
      %s100 = sphi 0, %s100
      %s102 = sphi 0, %s100
      %s103 = sphi 0, %s102
      %s117 = sphi 0, %s103
      %s123 = sphi 0, %s125
      %s126 = sphi 0, %s123
      %s127 = sphi 0, %s126
      %s143 = sphi 0, %s127
    $region4: #{tpu_custom_call.1} parent=1 // loop_header_branch
      %22 = sbr.rel (%p20) target = $region8
    $region5: #{tpu_custom_call.1} parent=1 // loop_body
      %s24 = ssub.s32 %s19, 1
      %s25 = ssub.s32 %s19, 2
      %s26 = sadd.s32 %s19, 1
      %s27 = ssub.s32 %s19, %s26
      %p28 = scmp.eq.s32.totalorder %s27, 0
      %s30 = sadd.s32 %s29, 1
      %s31 = scalar_select %p28, %s29, %s30
      %p34 = pneg %p28
      %p35 = scmp.eq.s32.totalorder %s19, 1
      %p36 = por %p34, %p35
      %p37 = scmp.ne.s32.totalorder %s29, %s32
      %p38 = scmp.eq.s32.totalorder %s19, 0
      %p39 = por %p37, %p38
      %p40 = scmp.ne.s32.totalorder %s29, %s32
      %p41 = scmp.eq.s32.totalorder %s24, 1
      %p42 = por %p40, %p41
      %p43 = scmp.ne.s32.totalorder %s32, %s33
      %p44 = scmp.eq.s32.totalorder %s24, 0
      %p45 = por %p43, %p44
      %p46 = scmp.ne.s32.totalorder %s32, %s33
      %p47 = scmp.eq.s32.totalorder %s25, 1
      %p48 = por %p46, %p47
      %p50 = scmp.ne.s32.totalorder %s33, %s49
      %p51 = scmp.eq.s32.totalorder %s25, 0
      %p52 = por %p50, %p51
      %s53 = ssub.s32 %s19, %s26
      %p54 = scmp.eq.s32.totalorder %s53, 0
      %s56 = sadd.s32 %s55, 1
      %s57 = scalar_select %p54, %s55, %s56
      %p60 = pneg %p54
      %p61 = scmp.eq.s32.totalorder %s19, 1
      %p62 = por %p60, %p61
      %p63 = scmp.ne.s32.totalorder %s55, %s58
      %p64 = scmp.eq.s32.totalorder %s19, 0
      %p65 = por %p63, %p64
      %p66 = scmp.ne.s32.totalorder %s55, %s58
      %p67 = scmp.eq.s32.totalorder %s24, 1
      %p68 = por %p66, %p67
      %p69 = scmp.ne.s32.totalorder %s58, %s59
      %p70 = scmp.eq.s32.totalorder %s24, 0
      %p71 = por %p69, %p70
      %p72 = scmp.ne.s32.totalorder %s58, %s59
      %p73 = scmp.eq.s32.totalorder %s25, 1
      %p74 = por %p72, %p73
      %p76 = scmp.ne.s32.totalorder %s59, %s75
      %p77 = scmp.eq.s32.totalorder %s25, 0
      %p78 = por %p76, %p77
      %s80 = sadd.s32 %s79, 1
      %p83 = scmp.eq.s32.totalorder %s19, 1
      %p84 = scmp.ne.s32.totalorder %s79, %s81
      %p85 = scmp.eq.s32.totalorder %s19, 0
      %p86 = por %p84, %p85
      %p87 = scmp.ne.s32.totalorder %s79, %s81
      %p88 = scmp.eq.s32.totalorder %s24, 1
      %p89 = por %p87, %p88
      %p90 = scmp.ne.s32.totalorder %s81, %s82
      %p91 = scmp.eq.s32.totalorder %s24, 0
      %p92 = por %p90, %p91
      %p93 = scmp.ne.s32.totalorder %s81, %s82
      %p94 = scmp.eq.s32.totalorder %s25, 1
      %p95 = por %p93, %p94
      %p97 = scmp.ne.s32.totalorder %s82, %s96
      %p98 = scmp.eq.s32.totalorder %s25, 0
      %p99 = por %p97, %p98
      %s101 = sadd.s32 %s100, 1
      %p104 = scmp.eq.s32.totalorder %s19, 1
      %p105 = scmp.ne.s32.totalorder %s100, %s102
      %p106 = scmp.eq.s32.totalorder %s19, 0
      %p107 = por %p105, %p106
      %p108 = scmp.ne.s32.totalorder %s100, %s102
      %p109 = scmp.eq.s32.totalorder %s24, 1
      %p110 = por %p108, %p109
      %p111 = scmp.ne.s32.totalorder %s102, %s103
      %p112 = scmp.eq.s32.totalorder %s24, 0
      %p113 = por %p111, %p112
      %p114 = scmp.ne.s32.totalorder %s102, %s103
      %p115 = scmp.eq.s32.totalorder %s25, 1
      %p116 = por %p114, %p115
      %p118 = scmp.ne.s32.totalorder %s103, %s117
      %p119 = scmp.eq.s32.totalorder %s25, 0
      %p120 = por %p118, %p119
      %s121 = ssub.s32 %s19, %s26
      %p122 = scmp.eq.s32.totalorder %s121, 0
      %s124 = sadd.s32 %s123, 1
      %s125 = scalar_select %p122, %s123, %s124
      %p128 = pneg %p122
      %p129 = scmp.eq.s32.totalorder %s19, 1
      %p130 = por %p128, %p129
      %p131 = scmp.ne.s32.totalorder %s123, %s126
      %p132 = scmp.eq.s32.totalorder %s19, 0
      %p133 = por %p131, %p132
      %p134 = scmp.ne.s32.totalorder %s123, %s126
      %p135 = scmp.eq.s32.totalorder %s24, 1
      %p136 = por %p134, %p135
      %p137 = scmp.ne.s32.totalorder %s126, %s127
      %p138 = scmp.eq.s32.totalorder %s24, 0
      %p139 = por %p137, %p138
      %p140 = scmp.ne.s32.totalorder %s126, %s127
      %p141 = scmp.eq.s32.totalorder %s25, 1
      %p142 = por %p140, %p141
      %p144 = scmp.ne.s32.totalorder %s127, %s143
      %p145 = scmp.eq.s32.totalorder %s25, 0
      %p146 = por %p144, %p145
      %p147 = scmp.le.s32.totalorder 1, %s19
      %p148 = scmp.lt.s32.totalorder %s19, 3
      %p149 = pnand %p147, %p148
      %p150 = pneg %p149
      // Predicated region
      $region9: #{tpu_custom_call.1} parent=5 // pred_check
        _
      $region10: #{tpu_custom_call.1} parent=5 // pred_check_branch
        %152 = sbr.rel (%p149) target = $region12
      $region11: #{tpu_custom_call.1} parent=5 // pred_region
        %s153 = ssub.s32 %s19, 1
        // Predicated region
        $region13: #{tpu_custom_call.1} parent=11 // pred_check
          %p154 = pneg %p92
        $region14: #{tpu_custom_call.1} parent=11 // pred_check_branch
          %156 = sbr.rel (%p154) target = $region16
        $region15: #{tpu_custom_call.1} parent=11 // pred_region
          %158 = vsyncadd [#allocation8], 0
          %s159 = sshll.u32 %s2, 4
          %s160 = int_to_ptr.hbm [resolvable:$true] %s159
          %s161 = sshll.u32 [#allocation9], 4
          %s162 = int_to_ptr.vmem [resolvable:$true] %s161
          %167 = dma.hbm_to_vmem [thread:$0]  %s160, 1024, %s162, [#allocation8], 64, 64, 4
        $region16: #{tpu_custom_call.1} parent=11 // pred_fallthru
          _
        // Predicated region
        $region17: #{tpu_custom_call.1} parent=11 // pred_check
          %p168 = pneg %p113
        $region18: #{tpu_custom_call.1} parent=11 // pred_check_branch
          %170 = sbr.rel (%p168) target = $region20
        $region19: #{tpu_custom_call.1} parent=11 // pred_region
          _
        $region20: #{tpu_custom_call.1} parent=11 // pred_fallthru
          _
      $region12: #{tpu_custom_call.1} parent=5 // pred_fallthru
        _
      %p171 = scmp.lt.s32.totalorder %s19, 2
      // Predicated region
      $region21: #{tpu_custom_call.1} parent=5 // pred_check
        %p172 = pneg %p171
      $region22: #{tpu_custom_call.1} parent=5 // pred_check_branch
        %174 = sbr.rel (%p172) target = $region24
      $region23: #{tpu_custom_call.1} parent=5 // pred_region
        // Predicated region
        $region25: #{tpu_custom_call.1} parent=23 // pred_check
          %p175 = pneg %p39
        $region26: #{tpu_custom_call.1} parent=23 // pred_check_branch
          %177 = sbr.rel (%p175) target = $region28
        $region27: #{tpu_custom_call.1} parent=23 // pred_region
          %s178 = sand.u32 %s29, 1
          %s179 = scalar_lea.sflag [#allocation5], %s178
          %s180 = sand.u32 %s29, 1
          %s181 = smul.addr %s180, 4
          %s182 = scalar_lea.vmem [#allocation4], %s181
          %184 = vsyncadd %s179, 0
          %s185 = smul.addr %s19, 4
          %s186 = scalar_lea.hbm %s0, %s185
          %s188 = sshll.u32 %s186, 4
          %s189 = int_to_ptr.hbm [resolvable:$true] %s188
          %s190 = sshll.u32 %s182, 4
          %s191 = int_to_ptr.vmem [resolvable:$true] %s190
          %193 = dma.hbm_to_vmem [thread:$0]  %s189, 64, %s191, %s179
        $region28: #{tpu_custom_call.1} parent=23 // pred_fallthru
          _
        // Predicated region
        $region29: #{tpu_custom_call.1} parent=23 // pred_check
          %p194 = pneg %p65
        $region30: #{tpu_custom_call.1} parent=23 // pred_check_branch
          %196 = sbr.rel (%p194) target = $region32
        $region31: #{tpu_custom_call.1} parent=23 // pred_region
          %s197 = sand.u32 %s19, 1
          %s198 = scalar_lea.sflag [#allocation8], %s197
          %s199 = sand.u32 %s55, 1
          %s200 = smul.addr %s199, 2
          %s201 = scalar_lea.vmem [#allocation7], %s200
          %203 = vsyncadd %s198, 0
          %s204 = smul.addr %s19, 2
          %s205 = scalar_lea.hbm %s1, %s204
          %s207 = sshll.u32 %s205, 4
          %s208 = int_to_ptr.hbm [resolvable:$true] %s207
          %s209 = sshll.u32 %s201, 4
          %s210 = int_to_ptr.vmem [resolvable:$true] %s209
          %212 = dma.hbm_to_vmem [thread:$0]  %s208, 32, %s210, %s198
        $region32: #{tpu_custom_call.1} parent=23 // pred_fallthru
          _
      $region24: #{tpu_custom_call.1} parent=5 // pred_fallthru
        _
      %p213 = scmp.le.s32.totalorder 1, %s19
      %p214 = scmp.lt.s32.totalorder %s19, 3
      %p215 = pnand %p213, %p214
      %p216 = pneg %p215
      // Predicated region
      $region33: #{tpu_custom_call.1} parent=5 // pred_check
        _
      $region34: #{tpu_custom_call.1} parent=5 // pred_check_branch
        %218 = sbr.rel (%p215) target = $region36
      $region35: #{tpu_custom_call.1} parent=5 // pred_region
        %s219 = ssub.s32 %s19, 1
        %s220 = sand.u32 %s32, 1
        %s221 = scalar_lea.sflag [#allocation5], %s220
        %s222 = sand.u32 %s32, 1
        %s223 = smul.addr %s222, 4
        %s224 = scalar_lea.vmem [#allocation4], %s223
        // Predicated region
        $region37: #{tpu_custom_call.1} parent=35 // pred_check
          %p225 = pneg %p45
        $region38: #{tpu_custom_call.1} parent=35 // pred_check_branch
          %227 = sbr.rel (%p225) target = $region40
        $region39: #{tpu_custom_call.1} parent=35 // pred_region
          %229 = dma.done %s221, 64
        $region40: #{tpu_custom_call.1} parent=35 // pred_fallthru
          _
        %s230 = sand.u32 %s24, 1
        %s231 = scalar_lea.sflag [#allocation8], %s230
        %s232 = sand.u32 %s58, 1
        %s233 = smul.addr %s232, 2
        %s234 = scalar_lea.vmem [#allocation7], %s233
        // Predicated region
        $region41: #{tpu_custom_call.1} parent=35 // pred_check
          %p235 = pneg %p71
        $region42: #{tpu_custom_call.1} parent=35 // pred_check_branch
          %237 = sbr.rel (%p235) target = $region44
        $region43: #{tpu_custom_call.1} parent=35 // pred_region
          %239 = dma.done %s231, 32
        $region44: #{tpu_custom_call.1} parent=35 // pred_fallthru
          _
        // Predicated region
        $region45: #{tpu_custom_call.1} parent=35 // pred_check
          %p240 = pneg %p92
        $region46: #{tpu_custom_call.1} parent=35 // pred_check_branch
          %242 = sbr.rel (%p240) target = $region48
        $region47: #{tpu_custom_call.1} parent=35 // pred_region
          %244 = dma.done [#allocation8], 1024
        $region48: #{tpu_custom_call.1} parent=35 // pred_fallthru
          _
        %s245 = sand.u32 %s32, 1
        %s246 = scalar_lea.sflag [#allocation5], %s245
        %s247 = sand.u32 %s32, 1
        %s248 = smul.addr %s247, 4
        %s249 = scalar_lea.vmem [#allocation4], %s248
        %p250 = pneg %p45
        %p251 = pneg %p42
        %s252 = sand.u32 %s24, 1
        %s253 = scalar_lea.sflag [#allocation8], %s252
        %s254 = sand.u32 %s58, 1
        %s255 = smul.addr %s254, 2
        %s256 = scalar_lea.vmem [#allocation7], %s255
        %p257 = pneg %p71
        %p258 = pneg %p68
        %p259 = pneg %p92
        %p260 = pneg %p89
        %p261 = pneg %p113
        %p262 = pneg %p110
        %p263 = pneg %p139
        %p264 = pneg %p136
        %s265 = sand.u32 %s126, 1
        %s266 = scalar_lea.sflag [#allocation6], %s265
        %s267 = sand.u32 %s126, 1
        %s268 = smul.addr %s267, 8
        %s269 = scalar_lea.vmem [#allocation10], %s268
        %v273 = vld [vmem:[%s224] sm:$0xf]
        %v274 = vld [vmem:[#allocation9] sm:$0xf]
        %v275 = vld [vmem:[#allocation9 + $0x4] sm:$0xf]
        %v276 = vld [vmem:[#allocation9 + $0x8] sm:$0xf]
        %v277 = vld [vmem:[#allocation9 + $0xc] sm:$0xf]
        %v278 = vld [vmem:[#allocation9 + $0x10] sm:$0xf]
        %v279 = vld [vmem:[#allocation9 + $0x14] sm:$0xf]
        %v280 = vld [vmem:[#allocation9 + $0x18] sm:$0xf]
        %v281 = vld [vmem:[#allocation9 + $0x1c] sm:$0xf]
        %v282 = vld [vmem:[#allocation9 + $0x20] sm:$0xf]
        %v283 = vld [vmem:[#allocation9 + $0x24] sm:$0xf]
        %v284 = vld [vmem:[#allocation9 + $0x28] sm:$0xf]
        %v285 = vld [vmem:[#allocation9 + $0x2c] sm:$0xf]
        %v286 = vld [vmem:[#allocation9 + $0x30] sm:$0xf]
        %v287 = vld [vmem:[#allocation9 + $0x34] sm:$0xf]
        %v288 = vld [vmem:[#allocation9 + $0x38] sm:$0xf]
        %v289 = vld [vmem:[#allocation9 + $0x3c] sm:$0xf]
        %v290 = vld [vmem:[%s3] sm:$0x1]
        %v292 = vperm.slane %v290, 0
        %v310 = vunpack.c.l.b16 %v274
        %v311 = vunpack.c.l.b16 %v275
        %v312 = vunpack.c.l.b16 %v276
        %v313 = vunpack.c.l.b16 %v277
        %v314 = vunpack.c.l.b16 %v278
        %v315 = vunpack.c.l.b16 %v279
        %v316 = vunpack.c.l.b16 %v280
        %v317 = vunpack.c.l.b16 %v281
        %v318 = vunpack.c.l.b16 %v282
        %v319 = vunpack.c.l.b16 %v283
        %v320 = vunpack.c.l.b16 %v284
        %v321 = vunpack.c.l.b16 %v285
        %v322 = vunpack.c.l.b16 %v286
        %v323 = vunpack.c.l.b16 %v287
        %v324 = vunpack.c.l.b16 %v288
        %v325 = vunpack.c.l.b16 %v289
        %v326 = vpack.c.b16 %v311, %v310
        %v327 = vpack.c.b16 %v313, %v312
        %v328 = vpack.c.b16 %v315, %v314
        %v329 = vpack.c.b16 %v317, %v316
        %v330 = vpack.c.b16 %v319, %v318
        %v331 = vpack.c.b16 %v321, %v320
        %v332 = vpack.c.b16 %v323, %v322
        %v333 = vpack.c.b16 %v325, %v324
        %342 = vmatpush.bf16.msra.mxu0 %v333
        %343 = vmatpush.bf16.msra.mxu0 %v332
        %344 = vmatpush.bf16.msra.mxu0 %v331
        %345 = vmatpush.bf16.msra.mxu0 %v330
        %346 = vmatpush.bf16.msra.mxu0 %v329
        %347 = vmatpush.bf16.msra.mxu0 %v328
        %348 = vmatpush.bf16.msra.mxu0 %v327
        %349 = vmatpush.bf16.msra.mxu0 %v326
        %350 = vmatmul.bf16.gmra.mxu0 %v273
        %v351 = vpop.f32.mrf.mxu0
        %v352 = vadd.f32 %v292, %v351
        %v353 = vpop.f32.mrf.mxu0
        %354 = vdwg.mxu0
        %v355 = vpack.c.bf16 %v352, %v352
        %356 = vst [vmem:[#allocation2] sm:$0xf] %v355
        %358 = vrot.lane.b32.xlu0 %v352, 96
        %v359 = vpop.permute.xlu0 %358
        %vm361 = vcmask 15360
        %362 = vst.msk [vmem:[#allocation3] sm:$0xff] %vm361, %v359
        %v363 = vld [vmem:[#allocation2] sm:$0xf]
        %v364 = vld [vmem:[#allocation3] sm:$0xff]
        %366 = vrot.lane.b32.xlu0 %v364, 127
        %v367 = vpop.permute.xlu0 %366
        %369 = vxpose.xlu0.b32.start [1/16] %v367, 128
        %370 = vxpose.xlu0.b32.cont [2/16] 0.0, 128
        %371 = vxpose.xlu0.b32.cont [3/16] 0.0, 128
        %372 = vxpose.xlu0.b32.cont [4/16] 0.0, 128
        %373 = vxpose.xlu0.b32.cont [5/16] 0.0, 128
        %374 = vxpose.xlu0.b32.cont [6/16] 0.0, 128
        %375 = vxpose.xlu0.b32.cont [7/16] 0.0, 128
        %376 = vxpose.xlu0.b32.cont [8/16] 0.0, 128
        %377 = vxpose.xlu0.b32.cont [9/16] 0.0, 128
        %378 = vxpose.xlu0.b32.cont [10/16] 0.0, 128
        %379 = vxpose.xlu0.b32.cont [11/16] 0.0, 128
        %380 = vxpose.xlu0.b32.cont [12/16] 0.0, 128
        %381 = vxpose.xlu0.b32.cont [13/16] 0.0, 128
        %382 = vxpose.xlu0.b32.cont [14/16] 0.0, 128
        %383 = vxpose.xlu0.b32.cont [15/16] 0.0, 128
        %384 = vxpose.xlu0.b32.end [16/16] 0.0, 128
        %v385 = vpop.trf.xlu0
        %v386 = vpop.trf.xlu0
        %v387 = vpop.trf.xlu0
        %v388 = vpop.trf.xlu0
        %v389 = vpop.trf.xlu0
        %v390 = vpop.trf.xlu0
        %v391 = vpop.trf.xlu0
        %v392 = vpop.trf.xlu0
        %v393 = vpop.trf.xlu0
        %v394 = vpop.trf.xlu0
        %v395 = vpop.trf.xlu0
        %v396 = vpop.trf.xlu0
        %v397 = vpop.trf.xlu0
        %v398 = vpop.trf.xlu0
        %v399 = vpop.trf.xlu0
        %v400 = vpop.trf.xlu0
        %s401 = sadd.s32 0, 0
        %s402 = scalar_lea.vmem [#allocation3], %s401
        %v403 = vld [vmem:[%s402] sm:$0xff]
        %405 = vset.pattern.permute.xlu0 0
        %406 = vperm.xlu0 %405, %v403
        %v407 = vpop.permute.xlu0 %406
        %v409 = vperm.slane %v385, 0
        %v410 = vadd.f32 %v407, %v409
        %v411 = vmul.f32 %v410, 0.2
        %v412 = vmax.f32 %v410, %v411
        %v413 = vld [vmem:[%s234] sm:$0x3]
        %vm414 = vnez %v413
        %v415 = vsel %vm414, 16843009, 0
        %v416 = vunpack.c.0.s8 %v415
        %vm417 = vcmp.ne.s32.totalorder %v416, 0
        %v418 = vsel %vm417, -10000.0, %v412
        %vm419 = vcmask 64512
        %v420 = vsel %vm419, %v418, -inf
        %421 = vmax.xlane.f32.xlu0 %v420
        %v422 = vpop.xlane.xlu0 %421
        %v423 = vsub.f32 %v418, %v422
        %v424 = vmul.f32 %v423, 1.442695
        %v425 = vpow.pop %v424
        %v426 = vsel %vm419, %v425, 0.0
        %427 = vadd.xlane.f32.xlu0 %v426
        %v428 = vpop.xlane.xlu0 %427
        %v429 = vrcp.pop %v428
        %v430 = vmul.f32 %v425, %v429
        %v431 = vpack.c.bf16 %v430, %v430
        %v433 = vsel %vm419, %v431, 0
        %vm435 = vcmask 1043456
        %v437 = vsel %vm435, %v363, 0
        %439 = vmatpush.bf16.msra.mxu0 0
        %440 = vmatpush.bf16.msra.mxu0 0
        %441 = vmatpush.bf16.msra.mxu0 0
        %442 = vmatpush.bf16.msra.mxu0 0
        %443 = vmatpush.bf16.msra.mxu0 0
        %444 = vmatpush.bf16.msra.mxu0 0
        %445 = vmatpush.bf16.msra.mxu0 0
        %446 = vmatpush.bf16.msra.mxu0 %v437
        %447 = vmatmul.bf16.gmra.mxu0 %v433
        %v448 = vpop.f32.mrf.mxu0
        %v449 = vadd.f32 0.0, %v448
        %v450 = vpop.f32.mrf.mxu0
        %451 = vdwg.mxu0
        %s452 = scalar_lea.vmem %s269, %s401 [#allocation10]
        %453 = vst [vmem:[%s452] sm:$0xff] %v449
        %s454 = sand.u32 %s126, 1
        %s455 = scalar_lea.sflag [#allocation6], %s454
        %s456 = sand.u32 %s126, 1
        %s457 = smul.addr %s456, 8
        %s458 = scalar_lea.vmem [#allocation10], %s457
        // Predicated region
        $region49: #{tpu_custom_call.1} parent=35 // pred_check
          %p459 = pneg %p136
        $region50: #{tpu_custom_call.1} parent=35 // pred_check_branch
          %461 = sbr.rel (%p459) target = $region52
        $region51: #{tpu_custom_call.1} parent=35 // pred_region
          %463 = vsyncadd %s455, 0
          %s464 = smul.addr %s24, 8
          %s465 = scalar_lea.hbm %s4, %s464
          %s467 = sshll.u32 %s458, 4
          %s468 = int_to_ptr.vmem [resolvable:$true] %s467
          %s469 = sshll.u32 %s465, 4
          %s470 = int_to_ptr.hbm [resolvable:$true] %s469
          %472 = dma.vmem_to_hbm [thread:$0]  %s468, 128, %s470, %s455
        $region52: #{tpu_custom_call.1} parent=35 // pred_fallthru
          _
      $region36: #{tpu_custom_call.1} parent=5 // pred_fallthru
        _
      %p473 = scmp.le.s32.totalorder 2, %s19
      // Predicated region
      $region53: #{tpu_custom_call.1} parent=5 // pred_check
        %p474 = pneg %p473
      $region54: #{tpu_custom_call.1} parent=5 // pred_check_branch
        %476 = sbr.rel (%p474) target = $region56
      $region55: #{tpu_custom_call.1} parent=5 // pred_region
        %s477 = ssub.s32 %s19, 2
        // Predicated region
        $region57: #{tpu_custom_call.1} parent=55 // pred_check
          %p478 = pneg %p142
        $region58: #{tpu_custom_call.1} parent=55 // pred_check_branch
          %480 = sbr.rel (%p478) target = $region60
        $region59: #{tpu_custom_call.1} parent=55 // pred_region
          %s481 = sand.u32 %s127, 1
          %s482 = scalar_lea.sflag [#allocation6], %s481
          %s483 = sand.u32 %s127, 1
          %s484 = smul.addr %s483, 8
          %s485 = scalar_lea.vmem [#allocation10], %s484
          %487 = dma.done %s482, 128
        $region60: #{tpu_custom_call.1} parent=55 // pred_fallthru
          _
      $region56: #{tpu_custom_call.1} parent=5 // pred_fallthru
        _
    $region6: #{tpu_custom_call.1} parent=1 // loop_footer
      %s23 = sadd.s32 1, %s19
    $region7: #{tpu_custom_call.1} parent=1 // loop_footer_branch
      %18 = sbr.rel target = $region3
    $region8: #{tpu_custom_call.1} parent=1 // loop_exit
      _
    %488 = vsyncpa [#allocation5], 1
    %s489 = scalar_lea.sflag [#allocation5], 1
    %490 = vsyncpa %s489, 1
    %491 = vsyncpa [#allocation8], 1
    %s492 = scalar_lea.sflag [#allocation8], 1
    %493 = vsyncpa %s492, 1
    %494 = vsyncpa [#allocation6], 1
    %s495 = scalar_lea.sflag [#allocation6], 1
    %496 = vsyncpa %s495, 1

</llo_original>
